<compile_context>
chip_gen: v5e
topology: v5e:2x2
jax: 0.10.0
libtpu: 0.0.40
codegen_flags: <defaults>
</compile_context>

<pallas_src>
import jax
import jax.numpy as jnp
from jax.experimental import pallas as pl
from jax.experimental.pallas import tpu as pltpu

BN_EPS = 1e-5
SQUASH_EPS = 1e-7
PACK = 8  # node-rows packed per lane-row (PACK*F and PACK*D are lane multiples)


def _first_capsule_kernel(x_ref, m_ref, w_ref, b_ref, expand_ref, gsum_ref, o_ref):
    # x_ref:  (TMp, PACK*F) bf16      m_ref: (TMp, PACK) f32
    # w_ref:  (PACK*F, PACK*D) bf16 block-diagonal (BN folded in)
    # b_ref:  (1, PACK*D) f32         expand_ref: (PACK, PACK*D) f32 0/1
    # gsum_ref: (PACK*D, PACK*D) bf16 0/1 block-diagonal-ones
    # o_ref:  (TMp, PACK*D) f32

    # Fused (BN-folded) disentangle linears + bias + ReLU. bf16 operands, f32 acc.
    z = jnp.dot(x_ref[...], w_ref[...], preferred_element_type=jnp.float32)
    z = jnp.maximum(z + b_ref[...], 0.0)

    # sparse2dense: zero rows where mask == 0.  Expand the (TMp, PACK) 0/1 mask
    # to (TMp, PACK*D) with a tiny constant 0/1 matmul (exact).
    z = z * jnp.dot(m_ref[...], expand_ref[...], preferred_element_type=jnp.float32)

    # squash along each capsule (groups of D lanes): per-group sum of squares,
    # broadcast back to its group, via the constant block-diag-ones matmul.
    zz = (z * z).astype(gsum_ref.dtype)
    sq = jnp.dot(zz, gsum_ref[...], preferred_element_type=jnp.float32)
    # scale = sq / ((1+sq)*sqrt(sq+eps)), expressed as rsqrt + approx-reciprocal
    # so both transcendentals go to the otherwise-idle EUP slot.
    scale = sq * jax.lax.rsqrt(sq + SQUASH_EPS) * pl.reciprocal(1.0 + sq, approx=True)
    o_ref[...] = (z * scale).astype(o_ref.dtype)


def _round_up(a, b):
    return -(-a // b) * b


def first_capsule_layer(x, mask, params, *, tile_m=8192):
    """x: (B, N, F) float32, mask: (B, N) bool. Returns (B, N, D) float32."""
    B, N, F = x.shape
    D = params["w"].shape[1]
    rows = B * N
    # Lane-dense packing requires PACK*F and PACK*D to be multiples of 128.
    assert (PACK * F) % 128 == 0 and (PACK * D) % 128 == 0, (
        "number_of_features and capsule_dimensions must be multiples of 16")

    # Row tile: >=2 grid steps so v7x megacore shards the row loop; round the
    # tile to 128 rows (tmp multiple of 16 -> valid bf16 sublane packing),
    # large tiles amortize the ~0.35us per-grid-step overhead.
    n_steps = max(2, -(-rows // tile_m))
    tile = _round_up(-(-rows // n_steps), 128)
    rows_p = n_steps * tile
    tmp = tile // PACK

    f32 = lambda a: jnp.asarray(a, jnp.float32)

    # --- Fold eval-mode BatchNorm into the fused linear (pure affine fold) ---
    #   y = x*s + (beta - mean*s),  s = gamma * rsqrt(var + eps)
    #   z = y @ W + b = x @ (diag(s) W) + ((beta - mean*s) @ W + b)
    s = f32(params["gamma"]) * jax.lax.rsqrt(f32(params["running_var"]) + BN_EPS)
    w_fold = s[:, None] * f32(params["w"])                                   # (F, D)
    b_fold = (f32(params["beta"]) - f32(params["running_mean"]) * s) @ f32(params["w"]) \
             + f32(params["b"])                                              # (D,)

    # --- Packed, lane-dense input streams ---
    x2 = x.reshape(rows, F).astype(jnp.float32)
    m1 = mask.reshape(rows).astype(jnp.float32)
    if rows_p != rows:
        x2 = jnp.pad(x2, ((0, rows_p - rows), (0, 0)))
        m1 = jnp.pad(m1, (0, rows_p - rows))          # padded rows are masked out
    x8 = x2.reshape(rows_p // PACK, PACK * F).astype(jnp.bfloat16)   # bf16 HBM stream
    m8 = m1.reshape(rows_p // PACK, PACK)

    # --- Constant operands (built once; streamed with index_map -> (0, 0)) ---
    w_bd = jnp.kron(jnp.eye(PACK, dtype=jnp.float32), w_fold).astype(jnp.bfloat16)  # (PACK*F, PACK*D)
    b8 = jnp.tile(b_fold, PACK).reshape(1, PACK * D)                                 # (1, PACK*D) f32
    dl = PACK * D
    lane = jnp.arange(dl)
    expand = (lane[None, :] // D == jnp.arange(PACK)[:, None]).astype(jnp.float32)   # (PACK, dl)
    gsum = (lane[:, None] // D == lane[None, :] // D).astype(jnp.bfloat16)           # (dl, dl)

    grid = (rows_p // tile,)
    row_spec = lambda shape: pl.BlockSpec(shape, lambda i: (i, 0))
    const_spec = lambda shape: pl.BlockSpec(shape, lambda i: (0, 0))

    cost = pl.CostEstimate(
        flops=16 * rows_p * D * (F + D + 1),
        transcendentals=2 * rows_p * D,
        bytes_accessed=(2 * rows_p * F + 4 * rows_p * D + 4 * rows_p
                        + 2 * (PACK * F) * dl + 2 * dl * dl + 4 * dl * (PACK + 1)),
    )

    out = pl.pallas_call(
        _first_capsule_kernel,
        out_shape=jax.ShapeDtypeStruct((rows_p // PACK, PACK * D), jnp.float32),
        grid_spec=pltpu.PrefetchScalarGridSpec(
            num_scalar_prefetch=0,
            grid=grid,
            in_specs=[
                row_spec((tmp, PACK * F)),          # packed node features (bf16)
                row_spec((tmp, PACK)),              # packed per-row mask
                const_spec((PACK * F, PACK * D)),   # block-diag fused (BN-folded) weight
                const_spec((1, PACK * D)),          # fused bias (tiled PACK x)
                const_spec((PACK, PACK * D)),       # mask-expand 0/1 matrix
                const_spec((PACK * D, PACK * D)),   # group-sum 0/1 matrix
            ],
            out_specs=row_spec((tmp, PACK * D)),
        ),
        compiler_params=pltpu.CompilerParams(
            dimension_semantics=("parallel",)),
        cost_estimate=cost,
    )(x8, m8, w_bd, b8, expand, gsum)

    # Free row-major un-packing, drop padded rows.
    return out.reshape(rows_p, D)[:rows].reshape(B, N, D)


def _reference(x, mask, params):
    y = (x - params["running_mean"]) / jnp.sqrt(params["running_var"] + BN_EPS)
    y = y * params["gamma"] + params["beta"]
    z = jnp.maximum(jnp.einsum("bnf,fd->bnd", y, params["w"]) + params["b"], 0.0)
    z = z * mask[..., None].astype(z.dtype)
    sq = jnp.sum(z * z, axis=-1, keepdims=True)
    return (sq / (1.0 + sq)) * z / jnp.sqrt(sq + SQUASH_EPS)


if __name__ == "__main__":
    # Module hyper-params (small, consistent with __init__):
    number_of_features = 32
    max_node_num = 16
    capsule_dimensions = 16
    disentangle_num = 4
    batch_size = 2
    group_dim = capsule_dimensions // disentangle_num

    key = jax.random.PRNGKey(0)
    keys = jax.random.split(key, 10)

    x = jax.random.normal(keys[0], (batch_size, max_node_num, number_of_features),
                          dtype=jnp.float32)
    # node-validity mask (each graph has a different number of real nodes)
    node_counts = jnp.array([12, 9], dtype=jnp.int32)
    mask = (jnp.arange(max_node_num)[None, :] < node_counts[:, None])

    # Deterministic parameter init (synthetic, not a checkpoint).
    params = {
        "gamma": jax.random.uniform(keys[1], (number_of_features,), minval=0.5, maxval=1.5),
        "beta": 0.1 * jax.random.normal(keys[2], (number_of_features,)),
        "running_mean": 0.1 * jax.random.normal(keys[3], (number_of_features,)),
        "running_var": jax.random.uniform(keys[4], (number_of_features,), minval=0.5, maxval=1.5),
        # concat of disentangle_num Linear(F, D/d) weights -> fused (F, D) weight
        "w": jnp.concatenate(
            [0.2 * jax.random.normal(keys[5 + i], (number_of_features, group_dim))
             for i in range(disentangle_num)], axis=-1),
        "b": 0.05 * jax.random.normal(keys[9], (capsule_dimensions,)),
    }

    out = first_capsule_layer(x, mask, params)
    out = jax.block_until_ready(out)

    ref = _reference(x, mask, params)
    assert out.shape == (batch_size, max_node_num, capsule_dimensions)
    # bf16 x-stream / bf16 MXU operands -> relaxed tolerance vs the f32 reference.
    assert jnp.allclose(out, ref, atol=3e-2, rtol=3e-2), float(jnp.max(jnp.abs(out - ref)))
    print("KERNEL_OK")
</pallas_src>

<mosaic_0001>
module attributes {stable_mosaic.version = 11 : i64} {
  func.func @_first_capsule_kernel(%arg0: i32, %arg1: memref<16x256xbf16, #tpu.memory_space<vmem>>, %arg2: memref<16x8xf32, #tpu.memory_space<vmem>>, %arg3: memref<256x128xbf16, #tpu.memory_space<vmem>>, %arg4: memref<1x128xf32, #tpu.memory_space<vmem>>, %arg5: memref<8x128xf32, #tpu.memory_space<vmem>>, %arg6: memref<128x128xbf16, #tpu.memory_space<vmem>>, %arg7: memref<16x128xf32, #tpu.memory_space<vmem>>) attributes {dimension_semantics = [#tpu.dimension_semantics<parallel>], iteration_bounds = array<i64: 2>, scalar_prefetch = 0 : i64, scratch_operands = 0 : i64, tpu.core_type = #tpu.core_type<tc>, window_params = [{transform_indices = @transform_0, window_bounds = array<i64: 16, 256>}, {transform_indices = @transform_1, window_bounds = array<i64: 16, 8>}, {pipeline_mode = #tpu.pipeline_mode<synchronous>, transform_indices = @transform_2, window_bounds = array<i64: 256, 128>}, {pipeline_mode = #tpu.pipeline_mode<synchronous>, transform_indices = @transform_3, window_bounds = array<i64: 1, 128>}, {pipeline_mode = #tpu.pipeline_mode<synchronous>, transform_indices = @transform_4, window_bounds = array<i64: 8, 128>}, {pipeline_mode = #tpu.pipeline_mode<synchronous>, transform_indices = @transform_5, window_bounds = array<i64: 128, 128>}, {transform_indices = @transform_6, window_bounds = array<i64: 16, 128>}]} {
    %c0 = arith.constant 0 : index
    %c0_0 = arith.constant 0 : index
    %0 = vector.load %arg1[%c0, %c0_0] : memref<16x256xbf16, #tpu.memory_space<vmem>>, vector<16x256xbf16>
    %c0_1 = arith.constant 0 : index
    %c0_2 = arith.constant 0 : index
    %1 = vector.load %arg3[%c0_1, %c0_2] : memref<256x128xbf16, #tpu.memory_space<vmem>>, vector<256x128xbf16>
    %cst = arith.constant dense<0.000000e+00> : vector<16x128xf32>
    %2 = tpu.matmul %0, %1, %cst {dimension_numbers = #tpu.dot_dimension_numbers<[1], [0], [0], [1], [0, 0, 1, 1], [], []>} : vector<16x256xbf16>, vector<256x128xbf16>, vector<16x128xf32> -> vector<16x128xf32>
    %c0_3 = arith.constant 0 : index
    %c0_4 = arith.constant 0 : index
    %3 = vector.load %arg4[%c0_3, %c0_4] : memref<1x128xf32, #tpu.memory_space<vmem>>, vector<1x128xf32>
    %4 = vector.broadcast %3 : vector<1x128xf32> to vector<16x128xf32>
    %5 = arith.addf %2, %4 : vector<16x128xf32>
    %cst_5 = arith.constant 0.000000e+00 : f32
    %6 = vector.broadcast %cst_5 : f32 to vector<16x128xf32>
    %7 = arith.maximumf %5, %6 : vector<16x128xf32>
    %c0_6 = arith.constant 0 : index
    %c0_7 = arith.constant 0 : index
    %8 = vector.load %arg2[%c0_6, %c0_7] : memref<16x8xf32, #tpu.memory_space<vmem>>, vector<16x8xf32>
    %c0_8 = arith.constant 0 : index
    %c0_9 = arith.constant 0 : index
    %9 = vector.load %arg5[%c0_8, %c0_9] : memref<8x128xf32, #tpu.memory_space<vmem>>, vector<8x128xf32>
    %cst_10 = arith.constant dense<0.000000e+00> : vector<16x128xf32>
    %10 = tpu.matmul %8, %9, %cst_10 {dimension_numbers = #tpu.dot_dimension_numbers<[1], [0], [0], [1], [0, 0, 1, 1], [], []>} : vector<16x8xf32>, vector<8x128xf32>, vector<16x128xf32> -> vector<16x128xf32>
    %11 = arith.mulf %7, %10 : vector<16x128xf32>
    %12 = arith.mulf %11, %11 : vector<16x128xf32>
    %13 = arith.truncf %12 : vector<16x128xf32> to vector<16x128xbf16>
    %c0_11 = arith.constant 0 : index
    %c0_12 = arith.constant 0 : index
    %14 = vector.load %arg6[%c0_11, %c0_12] : memref<128x128xbf16, #tpu.memory_space<vmem>>, vector<128x128xbf16>
    %cst_13 = arith.constant dense<0.000000e+00> : vector<16x128xf32>
    %15 = tpu.matmul %13, %14, %cst_13 {dimension_numbers = #tpu.dot_dimension_numbers<[1], [0], [0], [1], [0, 0, 1, 1], [], []>} : vector<16x128xbf16>, vector<128x128xbf16>, vector<16x128xf32> -> vector<16x128xf32>
    %cst_14 = arith.constant 1.000000e-07 : f32
    %16 = vector.broadcast %cst_14 : f32 to vector<16x128xf32>
    %17 = arith.addf %15, %16 : vector<16x128xf32>
    %18 = math.rsqrt %17 : vector<16x128xf32>
    %19 = arith.mulf %15, %18 : vector<16x128xf32>
    %cst_15 = arith.constant 1.000000e+00 : f32
    %20 = vector.broadcast %cst_15 : f32 to vector<16x128xf32>
    %21 = arith.addf %20, %15 : vector<16x128xf32>
    %22 = tpu.reciprocal %21 {approx = true} : vector<16x128xf32> -> vector<16x128xf32>
    %23 = arith.mulf %19, %22 : vector<16x128xf32>
    %24 = arith.mulf %11, %23 : vector<16x128xf32>
    %c0_16 = arith.constant 0 : index
    %c0_17 = arith.constant 0 : index
    %25 = vector.load %arg7[%c0_16, %c0_17] : memref<16x128xf32, #tpu.memory_space<vmem>>, vector<16x128xf32>
    tpu.vector_store %arg7[%c0_16, %c0_17], %24 {strides = array<i32>} : memref<16x128xf32, #tpu.memory_space<vmem>>, vector<16x128xf32>,
    return
  }
  func.func @transform_0(%arg0: i32) -> (i32, i32) {
    %c0_i32 = arith.constant 0 : i32
    %c0_i32_0 = arith.constant 0 : i32
    return %arg0, %c0_i32 : i32, i32
  }
  func.func @transform_1(%arg0: i32) -> (i32, i32) {
    %c0_i32 = arith.constant 0 : i32
    %c0_i32_0 = arith.constant 0 : i32
    return %arg0, %c0_i32 : i32, i32
  }
  func.func @transform_2(%arg0: i32) -> (i32, i32) {
    %c0_i32 = arith.constant 0 : i32
    %c0_i32_0 = arith.constant 0 : i32
    %c0_i32_1 = arith.constant 0 : i32
    return %c0_i32, %c0_i32_0 : i32, i32
  }
  func.func @transform_3(%arg0: i32) -> (i32, i32) {
    %c0_i32 = arith.constant 0 : i32
    %c0_i32_0 = arith.constant 0 : i32
    %c0_i32_1 = arith.constant 0 : i32
    return %c0_i32, %c0_i32_0 : i32, i32
  }
  func.func @transform_4(%arg0: i32) -> (i32, i32) {
    %c0_i32 = arith.constant 0 : i32
    %c0_i32_0 = arith.constant 0 : i32
    %c0_i32_1 = arith.constant 0 : i32
    return %c0_i32, %c0_i32_0 : i32, i32
  }
  func.func @transform_5(%arg0: i32) -> (i32, i32) {
    %c0_i32 = arith.constant 0 : i32
    %c0_i32_0 = arith.constant 0 : i32
    %c0_i32_1 = arith.constant 0 : i32
    return %c0_i32, %c0_i32_0 : i32, i32
  }
  func.func @transform_6(%arg0: i32) -> (i32, i32) {
    %c0_i32 = arith.constant 0 : i32
    %c0_i32_0 = arith.constant 0 : i32
    return %arg0, %c0_i32 : i32, i32
  }
}

</mosaic_0001>

<llo_original>
// kernel: tpu_custom_call.1
$region0: #{tpu_custom_call.1}
  #allocation0 [shape = 'u32[]', space=smem, size = 0x4, offset = 0x4, fixed_abs, tag = 'smem constant byte address 0x4 - core index']
  #allocation1 [shape = 'u32[72,128]{1,0:T(1,128)}', space=vmem, size = 0x9000, scoped, tag = 'internal scratch']
  %s0 = inlined_call_operand.vmem [shape: bf16[32,256], index: 0, kind: input, shape index: {}]
  %s1 = inlined_call_operand.vmem [shape: f32[32,8], index: 1, kind: input, shape index: {}]
  %s2 = inlined_call_operand.hbm [shape: bf16[256,128], index: 2, kind: input, shape index: {}]
  %s3 = inlined_call_operand.vmem [shape: f32[1,128], index: 3, kind: input, shape index: {}]
  %s4 = inlined_call_operand.vmem [shape: f32[8,128], index: 4, kind: input, shape index: {}]
  %s5 = inlined_call_operand.hbm [shape: bf16[128,128], index: 5, kind: input, shape index: {}]
  %s6 = inlined_call_operand.hbm [shape: f32[32,128], index: 6, kind: output, shape index: {}]
  %s7 = sld [smem:[#allocation0]]
  $region65: #{tpu_custom_call.1} parent=0
    _
  %s9 = ssub.s32 1, %s7
  %s10 = scalar_select 0, %s9, %s7
  $region1: #{tpu_custom_call.1} parent=0
    #allocation2 [shape = 'u8[65536]{0}', space=vmem, size = 0x10000, scoped, tag = 'input window, operand 2, single buffered']
    #allocation3 [shape = 's32[2]{0}', space=sflag, size = 0x8, scoped, tag = 'scoped memory for tpu_custom_call.1']
    #allocation4 [shape = 's32[2]{0}', space=sflag, size = 0x8, scoped, tag = 'scoped memory for tpu_custom_call.1']
    #allocation5 [shape = 'u8[32768]{0}', space=vmem, size = 0x8000, scoped, tag = 'input window, operand 5, single buffered']
    #allocation6 [shape = 's32[1]{0}', space=sflag, size = 0x4, scoped, tag = 'scoped memory for tpu_custom_call.1']
    #allocation7 [shape = 'u8[16384]{0}', space=vmem, size = 0x4000, scoped, tag = 'output window, operand 0']
    %11 = vsyncpa [#allocation3], 0
    %12 = vsyncpa [#allocation6], 0
    %13 = vsyncpa [#allocation4], 0
    %s14 = scalar_lea.sflag [#allocation4], 1
    %15 = vsyncpa %s14, 0
    loop: start=0, step=1, limit=4
    $region2: #{tpu_custom_call.1} parent=1 // loop_pre_header
      _
    $region3: #{tpu_custom_call.1} parent=1 // loop_header
      %s17 = sphi 0, %s21
      %p18 = scmp.ge.s32.totalorder %s17, 4
      %s27 = sphi 0, %s29
      %s30 = sphi 0, %s27
      %s31 = sphi 0, %s30
      %s47 = sphi 0, %s31
      %s53 = sphi 0, %s55
      %s56 = sphi 0, %s53
      %s57 = sphi 0, %s56
      %s73 = sphi 0, %s57
      %s77 = sphi 0, %s77
      %s79 = sphi 0, %s77
      %s80 = sphi 0, %s79
      %s94 = sphi 0, %s80
      %s98 = sphi 0, %s98
      %s100 = sphi 0, %s98
      %s101 = sphi 0, %s100
      %s115 = sphi 0, %s101
      %s119 = sphi 0, %s119
      %s121 = sphi 0, %s119
      %s122 = sphi 0, %s121
      %s136 = sphi 0, %s122
      %s140 = sphi 0, %s140
      %s142 = sphi 0, %s140
      %s143 = sphi 0, %s142
      %s157 = sphi 0, %s143
      %s163 = sphi 0, %s165
      %s166 = sphi 0, %s163
      %s167 = sphi 0, %s166
      %s183 = sphi 0, %s167
    $region4: #{tpu_custom_call.1} parent=1 // loop_header_branch
      %20 = sbr.rel (%p18) target = $region8
    $region5: #{tpu_custom_call.1} parent=1 // loop_body
      %s22 = ssub.s32 %s17, 1
      %s23 = ssub.s32 %s17, 2
      %s24 = sadd.s32 %s17, 1
      %s25 = ssub.s32 %s17, %s24
      %p26 = scmp.eq.s32.totalorder %s25, 0
      %s28 = sadd.s32 %s27, 1
      %s29 = scalar_select %p26, %s27, %s28
      %p32 = pneg %p26
      %p33 = scmp.eq.s32.totalorder %s17, 1
      %p34 = por %p32, %p33
      %p35 = scmp.ne.s32.totalorder %s27, %s30
      %p36 = scmp.eq.s32.totalorder %s17, 0
      %p37 = por %p35, %p36
      %p38 = scmp.ne.s32.totalorder %s27, %s30
      %p39 = scmp.eq.s32.totalorder %s22, 1
      %p40 = por %p38, %p39
      %p41 = scmp.ne.s32.totalorder %s30, %s31
      %p42 = scmp.eq.s32.totalorder %s22, 0
      %p43 = por %p41, %p42
      %p44 = scmp.ne.s32.totalorder %s30, %s31
      %p45 = scmp.eq.s32.totalorder %s23, 1
      %p46 = por %p44, %p45
      %p48 = scmp.ne.s32.totalorder %s31, %s47
      %p49 = scmp.eq.s32.totalorder %s23, 0
      %p50 = por %p48, %p49
      %s51 = ssub.s32 %s17, %s24
      %p52 = scmp.eq.s32.totalorder %s51, 0
      %s54 = sadd.s32 %s53, 1
      %s55 = scalar_select %p52, %s53, %s54
      %p58 = pneg %p52
      %p59 = scmp.eq.s32.totalorder %s17, 1
      %p60 = por %p58, %p59
      %p61 = scmp.ne.s32.totalorder %s53, %s56
      %p62 = scmp.eq.s32.totalorder %s17, 0
      %p63 = por %p61, %p62
      %p64 = scmp.ne.s32.totalorder %s53, %s56
      %p65 = scmp.eq.s32.totalorder %s22, 1
      %p66 = por %p64, %p65
      %p67 = scmp.ne.s32.totalorder %s56, %s57
      %p68 = scmp.eq.s32.totalorder %s22, 0
      %p69 = por %p67, %p68
      %p70 = scmp.ne.s32.totalorder %s56, %s57
      %p71 = scmp.eq.s32.totalorder %s23, 1
      %p72 = por %p70, %p71
      %p74 = scmp.ne.s32.totalorder %s57, %s73
      %p75 = scmp.eq.s32.totalorder %s23, 0
      %p76 = por %p74, %p75
      %s78 = sadd.s32 %s77, 1
      %p81 = scmp.eq.s32.totalorder %s17, 1
      %p82 = scmp.ne.s32.totalorder %s77, %s79
      %p83 = scmp.eq.s32.totalorder %s17, 0
      %p84 = por %p82, %p83
      %p85 = scmp.ne.s32.totalorder %s77, %s79
      %p86 = scmp.eq.s32.totalorder %s22, 1
      %p87 = por %p85, %p86
      %p88 = scmp.ne.s32.totalorder %s79, %s80
      %p89 = scmp.eq.s32.totalorder %s22, 0
      %p90 = por %p88, %p89
      %p91 = scmp.ne.s32.totalorder %s79, %s80
      %p92 = scmp.eq.s32.totalorder %s23, 1
      %p93 = por %p91, %p92
      %p95 = scmp.ne.s32.totalorder %s80, %s94
      %p96 = scmp.eq.s32.totalorder %s23, 0
      %p97 = por %p95, %p96
      %s99 = sadd.s32 %s98, 1
      %p102 = scmp.eq.s32.totalorder %s17, 1
      %p103 = scmp.ne.s32.totalorder %s98, %s100
      %p104 = scmp.eq.s32.totalorder %s17, 0
      %p105 = por %p103, %p104
      %p106 = scmp.ne.s32.totalorder %s98, %s100
      %p107 = scmp.eq.s32.totalorder %s22, 1
      %p108 = por %p106, %p107
      %p109 = scmp.ne.s32.totalorder %s100, %s101
      %p110 = scmp.eq.s32.totalorder %s22, 0
      %p111 = por %p109, %p110
      %p112 = scmp.ne.s32.totalorder %s100, %s101
      %p113 = scmp.eq.s32.totalorder %s23, 1
      %p114 = por %p112, %p113
      %p116 = scmp.ne.s32.totalorder %s101, %s115
      %p117 = scmp.eq.s32.totalorder %s23, 0
      %p118 = por %p116, %p117
      %s120 = sadd.s32 %s119, 1
      %p123 = scmp.eq.s32.totalorder %s17, 1
      %p124 = scmp.ne.s32.totalorder %s119, %s121
      %p125 = scmp.eq.s32.totalorder %s17, 0
      %p126 = por %p124, %p125
      %p127 = scmp.ne.s32.totalorder %s119, %s121
      %p128 = scmp.eq.s32.totalorder %s22, 1
      %p129 = por %p127, %p128
      %p130 = scmp.ne.s32.totalorder %s121, %s122
      %p131 = scmp.eq.s32.totalorder %s22, 0
      %p132 = por %p130, %p131
      %p133 = scmp.ne.s32.totalorder %s121, %s122
      %p134 = scmp.eq.s32.totalorder %s23, 1
      %p135 = por %p133, %p134
      %p137 = scmp.ne.s32.totalorder %s122, %s136
      %p138 = scmp.eq.s32.totalorder %s23, 0
      %p139 = por %p137, %p138
      %s141 = sadd.s32 %s140, 1
      %p144 = scmp.eq.s32.totalorder %s17, 1
      %p145 = scmp.ne.s32.totalorder %s140, %s142
      %p146 = scmp.eq.s32.totalorder %s17, 0
      %p147 = por %p145, %p146
      %p148 = scmp.ne.s32.totalorder %s140, %s142
      %p149 = scmp.eq.s32.totalorder %s22, 1
      %p150 = por %p148, %p149
      %p151 = scmp.ne.s32.totalorder %s142, %s143
      %p152 = scmp.eq.s32.totalorder %s22, 0
      %p153 = por %p151, %p152
      %p154 = scmp.ne.s32.totalorder %s142, %s143
      %p155 = scmp.eq.s32.totalorder %s23, 1
      %p156 = por %p154, %p155
      %p158 = scmp.ne.s32.totalorder %s143, %s157
      %p159 = scmp.eq.s32.totalorder %s23, 0
      %p160 = por %p158, %p159
      %s161 = ssub.s32 %s17, %s24
      %p162 = scmp.eq.s32.totalorder %s161, 0
      %s164 = sadd.s32 %s163, 1
      %s165 = scalar_select %p162, %s163, %s164
      %p168 = pneg %p162
      %p169 = scmp.eq.s32.totalorder %s17, 1
      %p170 = por %p168, %p169
      %p171 = scmp.ne.s32.totalorder %s163, %s166
      %p172 = scmp.eq.s32.totalorder %s17, 0
      %p173 = por %p171, %p172
      %p174 = scmp.ne.s32.totalorder %s163, %s166
      %p175 = scmp.eq.s32.totalorder %s22, 1
      %p176 = por %p174, %p175
      %p177 = scmp.ne.s32.totalorder %s166, %s167
      %p178 = scmp.eq.s32.totalorder %s22, 0
      %p179 = por %p177, %p178
      %p180 = scmp.ne.s32.totalorder %s166, %s167
      %p181 = scmp.eq.s32.totalorder %s23, 1
      %p182 = por %p180, %p181
      %p184 = scmp.ne.s32.totalorder %s167, %s183
      %p185 = scmp.eq.s32.totalorder %s23, 0
      %p186 = por %p184, %p185
      %p187 = scmp.le.s32.totalorder 1, %s17
      %p188 = scmp.lt.s32.totalorder %s17, 3
      %p189 = pnand %p187, %p188
      %p190 = pneg %p189
      // Predicated region
      $region9: #{tpu_custom_call.1} parent=5 // pred_check
        _
      $region10: #{tpu_custom_call.1} parent=5 // pred_check_branch
        %192 = sbr.rel (%p189) target = $region12
      $region11: #{tpu_custom_call.1} parent=5 // pred_region
        %s193 = ssub.s32 %s17, 1
        // Predicated region
        $region13: #{tpu_custom_call.1} parent=11 // pred_check
          %p194 = pneg %p90
        $region14: #{tpu_custom_call.1} parent=11 // pred_check_branch
          %196 = sbr.rel (%p194) target = $region16
        $region15: #{tpu_custom_call.1} parent=11 // pred_region
          %198 = vsyncadd [#allocation3], 0
          %s199 = sshll.u32 %s2, 4
          %s200 = int_to_ptr.hbm [resolvable:$true] %s199
          %s201 = sshll.u32 [#allocation2], 4
          %s202 = int_to_ptr.vmem [resolvable:$true] %s201
          %207 = dma.hbm_to_vmem [thread:$0]  %s200, 2048, %s202, [#allocation3], 64, 64, 4
        $region16: #{tpu_custom_call.1} parent=11 // pred_fallthru
          _
        // Predicated region
        $region17: #{tpu_custom_call.1} parent=11 // pred_check
          %p208 = pneg %p111
        $region18: #{tpu_custom_call.1} parent=11 // pred_check_branch
          %210 = sbr.rel (%p208) target = $region20
        $region19: #{tpu_custom_call.1} parent=11 // pred_region
          _
        $region20: #{tpu_custom_call.1} parent=11 // pred_fallthru
          _
        // Predicated region
        $region21: #{tpu_custom_call.1} parent=11 // pred_check
          %p211 = pneg %p132
        $region22: #{tpu_custom_call.1} parent=11 // pred_check_branch
          %213 = sbr.rel (%p211) target = $region24
        $region23: #{tpu_custom_call.1} parent=11 // pred_region
          _
        $region24: #{tpu_custom_call.1} parent=11 // pred_fallthru
          _
        // Predicated region
        $region25: #{tpu_custom_call.1} parent=11 // pred_check
          %p214 = pneg %p153
        $region26: #{tpu_custom_call.1} parent=11 // pred_check_branch
          %216 = sbr.rel (%p214) target = $region28
        $region27: #{tpu_custom_call.1} parent=11 // pred_region
          %218 = vsyncadd [#allocation6], 0
          %s219 = sshll.u32 %s5, 4
          %s220 = int_to_ptr.hbm [resolvable:$true] %s219
          %s221 = sshll.u32 [#allocation5], 4
          %s222 = int_to_ptr.vmem [resolvable:$true] %s221
          %227 = dma.hbm_to_vmem [thread:$0]  %s220, 1024, %s222, [#allocation6], 64, 64, 4
        $region28: #{tpu_custom_call.1} parent=11 // pred_fallthru
          _
      $region12: #{tpu_custom_call.1} parent=5 // pred_fallthru
        _
      %p228 = scmp.lt.s32.totalorder %s17, 2
      // Predicated region
      $region29: #{tpu_custom_call.1} parent=5 // pred_check
        %p229 = pneg %p228
      $region30: #{tpu_custom_call.1} parent=5 // pred_check_branch
        %231 = sbr.rel (%p229) target = $region32
      $region31: #{tpu_custom_call.1} parent=5 // pred_region
        // Predicated region
        $region33: #{tpu_custom_call.1} parent=31 // pred_check
          %p232 = pneg %p37
        $region34: #{tpu_custom_call.1} parent=31 // pred_check_branch
          %234 = sbr.rel (%p232) target = $region36
        $region35: #{tpu_custom_call.1} parent=31 // pred_region
          %s235 = smul.u32 2, %s17
          %p236 = scmp.lt.s32.totalorder %s235, 3
          %s237 = scalar_select %p236, %s235, 3
          %s238 = smul.addr %s237, 2
          %s239 = smul.addr %s238, 4
          %s240 = scalar_lea.vmem %s0, %s239
          %s241 = smul.u32 2, %s17
        $region36: #{tpu_custom_call.1} parent=31 // pred_fallthru
          _
        // Predicated region
        $region37: #{tpu_custom_call.1} parent=31 // pred_check
          %p242 = pneg %p63
        $region38: #{tpu_custom_call.1} parent=31 // pred_check_branch
          %244 = sbr.rel (%p242) target = $region40
        $region39: #{tpu_custom_call.1} parent=31 // pred_region
          %s245 = smul.u32 2, %s17
          %p246 = scmp.lt.s32.totalorder %s245, 3
          %s247 = scalar_select %p246, %s245, 3
          %s248 = smul.addr %s247, 8
          %s249 = scalar_lea.vmem %s1, %s248
          %s250 = smul.u32 2, %s17
        $region40: #{tpu_custom_call.1} parent=31 // pred_fallthru
          _
      $region32: #{tpu_custom_call.1} parent=5 // pred_fallthru
        _
      %p251 = scmp.le.s32.totalorder 1, %s17
      %p252 = scmp.lt.s32.totalorder %s17, 3
      %p253 = pnand %p251, %p252
      %p254 = pneg %p253
      // Predicated region
      $region41: #{tpu_custom_call.1} parent=5 // pred_check
        _
      $region42: #{tpu_custom_call.1} parent=5 // pred_check_branch
        %256 = sbr.rel (%p253) target = $region44
      $region43: #{tpu_custom_call.1} parent=5 // pred_region
        %s257 = ssub.s32 %s17, 1
        // Predicated region
        $region45: #{tpu_custom_call.1} parent=43 // pred_check
          %p258 = pneg %p90
        $region46: #{tpu_custom_call.1} parent=43 // pred_check_branch
          %260 = sbr.rel (%p258) target = $region48
        $region47: #{tpu_custom_call.1} parent=43 // pred_region
          %262 = dma.done [#allocation3], 2048
        $region48: #{tpu_custom_call.1} parent=43 // pred_fallthru
          _
        // Predicated region
        $region49: #{tpu_custom_call.1} parent=43 // pred_check
          %p263 = pneg %p153
        $region50: #{tpu_custom_call.1} parent=43 // pred_check_branch
          %265 = sbr.rel (%p263) target = $region52
        $region51: #{tpu_custom_call.1} parent=43 // pred_region
          %267 = dma.done [#allocation6], 1024
        $region52: #{tpu_custom_call.1} parent=43 // pred_fallthru
          _
        %s268 = smul.u32 2, %s22
        %p269 = scmp.lt.s32.totalorder %s268, 3
        %s270 = scalar_select %p269, %s268, 3
        %s271 = smul.addr %s270, 2
        %s272 = smul.addr %s271, 4
        %s273 = scalar_lea.vmem %s0, %s272
        %p274 = pneg %p43
        %p275 = pneg %p40
        %s276 = smul.u32 2, %s22
        %p277 = scmp.lt.s32.totalorder %s276, 3
        %s278 = scalar_select %p277, %s276, 3
        %s279 = smul.addr %s278, 8
        %s280 = scalar_lea.vmem %s1, %s279
        %p281 = pneg %p69
        %p282 = pneg %p66
        %p283 = pneg %p90
        %p284 = pneg %p87
        %p285 = pneg %p111
        %p286 = pneg %p108
        %p287 = pneg %p132
        %p288 = pneg %p129
        %p289 = pneg %p153
        %p290 = pneg %p150
        %p291 = pneg %p179
        %p292 = pneg %p176
        %s293 = sand.u32 %s166, 1
        %s294 = scalar_lea.sflag [#allocation4], %s293
        %s295 = sand.u32 %s166, 1
        %s296 = smul.addr %s295, 16
        %s297 = scalar_lea.vmem [#allocation7], %s296
        %s298 = smul.u32 2, %s22
        %p299 = scmp.lt.s32.totalorder %s298, 3
        %s300 = scalar_select %p299, %s298, 3
        %s301 = smul.addr %s300, 2
        %s302 = smul.addr %s301, 4
        %s303 = scalar_lea.vmem %s0, %s302
        %s304 = smul.u32 2, %s22
        %s305 = smul.u32 2, %s22
        %p306 = scmp.lt.s32.totalorder %s305, 3
        %s307 = scalar_select %p306, %s305, 3
        %s308 = smul.addr %s307, 8
        %s309 = scalar_lea.vmem %s1, %s308
        %s310 = smul.u32 2, %s22
        %s311 = smul.u32 2, %s22
        %v312 = vld [vmem:[%s303] sm:$0xff]
        %v313 = vld [vmem:[%s303 + $0x8] sm:$0xff]
        %v314 = vld [vmem:[#allocation2] sm:$0xf]
        %v315 = vld [vmem:[#allocation2 + $0x4] sm:$0xf]
        %v316 = vld [vmem:[#allocation2 + $0x8] sm:$0xf]
        %v317 = vld [vmem:[#allocation2 + $0xc] sm:$0xf]
        %v318 = vld [vmem:[#allocation2 + $0x10] sm:$0xf]
        %v319 = vld [vmem:[#allocation2 + $0x14] sm:$0xf]
        %v320 = vld [vmem:[#allocation2 + $0x18] sm:$0xf]
        %v321 = vld [vmem:[#allocation2 + $0x1c] sm:$0xf]
        %v322 = vld [vmem:[#allocation2 + $0x20] sm:$0xf]
        %v323 = vld [vmem:[#allocation2 + $0x24] sm:$0xf]
        %v324 = vld [vmem:[#allocation2 + $0x28] sm:$0xf]
        %v325 = vld [vmem:[#allocation2 + $0x2c] sm:$0xf]
        %v326 = vld [vmem:[#allocation2 + $0x30] sm:$0xf]
        %v327 = vld [vmem:[#allocation2 + $0x34] sm:$0xf]
        %v328 = vld [vmem:[#allocation2 + $0x38] sm:$0xf]
        %v329 = vld [vmem:[#allocation2 + $0x3c] sm:$0xf]
        %v330 = vld [vmem:[#allocation2 + $0x40] sm:$0xf]
        %v331 = vld [vmem:[#allocation2 + $0x44] sm:$0xf]
        %v332 = vld [vmem:[#allocation2 + $0x48] sm:$0xf]
        %v333 = vld [vmem:[#allocation2 + $0x4c] sm:$0xf]
        %v334 = vld [vmem:[#allocation2 + $0x50] sm:$0xf]
        %v335 = vld [vmem:[#allocation2 + $0x54] sm:$0xf]
        %v336 = vld [vmem:[#allocation2 + $0x58] sm:$0xf]
        %v337 = vld [vmem:[#allocation2 + $0x5c] sm:$0xf]
        %v338 = vld [vmem:[#allocation2 + $0x60] sm:$0xf]
        %v339 = vld [vmem:[#allocation2 + $0x64] sm:$0xf]
        %v340 = vld [vmem:[#allocation2 + $0x68] sm:$0xf]
        %v341 = vld [vmem:[#allocation2 + $0x6c] sm:$0xf]
        %v342 = vld [vmem:[#allocation2 + $0x70] sm:$0xf]
        %v343 = vld [vmem:[#allocation2 + $0x74] sm:$0xf]
        %v344 = vld [vmem:[#allocation2 + $0x78] sm:$0xf]
        %v345 = vld [vmem:[#allocation2 + $0x7c] sm:$0xf]
        %v346 = vld [vmem:[%s3] sm:$0x1]
        %v348 = vperm.slane %v346, 0
        %v352 = vunpack.c.l.b16 %v312
        %v353 = vunpack.c.h.b16 %v312
        %v354 = vunpack.c.l.b16 %v313
        %v355 = vunpack.c.h.b16 %v313
        %v356 = vpack.c.b16 %v354, %v352
        %v357 = vpack.c.b16 %v355, %v353
        %v392 = vunpack.c.l.b16 %v314
        %v393 = vunpack.c.l.b16 %v315
        %v394 = vunpack.c.l.b16 %v316
        %v395 = vunpack.c.l.b16 %v317
        %v396 = vunpack.c.l.b16 %v318
        %v397 = vunpack.c.l.b16 %v319
        %v398 = vunpack.c.l.b16 %v320
        %v399 = vunpack.c.l.b16 %v321
        %v400 = vunpack.c.l.b16 %v322
        %v401 = vunpack.c.l.b16 %v323
        %v402 = vunpack.c.l.b16 %v324
        %v403 = vunpack.c.l.b16 %v325
        %v404 = vunpack.c.l.b16 %v326
        %v405 = vunpack.c.l.b16 %v327
        %v406 = vunpack.c.l.b16 %v328
        %v407 = vunpack.c.l.b16 %v329
        %v408 = vunpack.c.l.b16 %v330
        %v409 = vunpack.c.l.b16 %v331
        %v410 = vunpack.c.l.b16 %v332
        %v411 = vunpack.c.l.b16 %v333
        %v412 = vunpack.c.l.b16 %v334
        %v413 = vunpack.c.l.b16 %v335
        %v414 = vunpack.c.l.b16 %v336
        %v415 = vunpack.c.l.b16 %v337
        %v416 = vunpack.c.l.b16 %v338
        %v417 = vunpack.c.l.b16 %v339
        %v418 = vunpack.c.l.b16 %v340
        %v419 = vunpack.c.l.b16 %v341
        %v420 = vunpack.c.l.b16 %v342
        %v421 = vunpack.c.l.b16 %v343
        %v422 = vunpack.c.l.b16 %v344
        %v423 = vunpack.c.l.b16 %v345
        %v424 = vpack.c.b16 %v393, %v392
        %v425 = vpack.c.b16 %v395, %v394
        %v426 = vpack.c.b16 %v397, %v396
        %v427 = vpack.c.b16 %v399, %v398
        %v428 = vpack.c.b16 %v401, %v400
        %v429 = vpack.c.b16 %v403, %v402
        %v430 = vpack.c.b16 %v405, %v404
        %v431 = vpack.c.b16 %v407, %v406
        %v432 = vpack.c.b16 %v409, %v408
        %v433 = vpack.c.b16 %v411, %v410
        %v434 = vpack.c.b16 %v413, %v412
        %v435 = vpack.c.b16 %v415, %v414
        %v436 = vpack.c.b16 %v417, %v416
        %v437 = vpack.c.b16 %v419, %v418
        %v438 = vpack.c.b16 %v421, %v420
        %v439 = vpack.c.b16 %v423, %v422
        %456 = vmatpush.bf16.msra.mxu0 %v431
        %457 = vmatpush.bf16.msra.mxu0 %v430
        %458 = vmatpush.bf16.msra.mxu0 %v429
        %459 = vmatpush.bf16.msra.mxu0 %v428
        %460 = vmatpush.bf16.msra.mxu0 %v427
        %461 = vmatpush.bf16.msra.mxu0 %v426
        %462 = vmatpush.bf16.msra.mxu0 %v425
        %463 = vmatpush.bf16.msra.mxu0 %v424
        %464 = vmatmul.bf16.gmra.mxu0 %v356
        %v465 = vpop.f32.mrf.mxu0
        %v466 = vadd.f32 %v348, %v465
        %v467 = vpop.f32.mrf.mxu0
        %v468 = vadd.f32 %v348, %v467
        %469 = vdwg.mxu0
        %470 = vmatpush.bf16.msra.mxu0 %v439
        %471 = vmatpush.bf16.msra.mxu0 %v438
        %472 = vmatpush.bf16.msra.mxu0 %v437
        %473 = vmatpush.bf16.msra.mxu0 %v436
        %474 = vmatpush.bf16.msra.mxu0 %v435
        %475 = vmatpush.bf16.msra.mxu0 %v434
        %476 = vmatpush.bf16.msra.mxu0 %v433
        %477 = vmatpush.bf16.msra.mxu0 %v432
        %478 = vmatmul.bf16.gmra.mxu0 %v357
        %v479 = vpop.f32.mrf.mxu0
        %v480 = vadd.f32 %v466, %v479
        %v481 = vpop.f32.mrf.mxu0
        %v482 = vadd.f32 %v468, %v481
        %483 = vdwg.mxu0
        %v484 = vmax.f32 %v480, 0.0
        %v485 = vmax.f32 %v482, 0.0
        %v486 = vld [vmem:[%s309] sm:$0xff]
        %v487 = vld [vmem:[%s309 + $0x8] sm:$0xff]
        %v488 = vld [vmem:[%s4] sm:$0xff]
        %vm489 = vcmask 64512
        %v491 = vsel %vm489, %v486, 0
        %v494 = vsel %vm489, %v487, 0
        %496 = vmatpush.msra.mxu0 0.0
        %497 = vmatpush.msra.mxu0 0.0
        %498 = vmatpush.msra.mxu0 0.0
        %499 = vmatpush.msra.mxu0 0.0
        %500 = vmatpush.msra.mxu0 0.0
        %501 = vmatpush.msra.mxu0 0.0
        %502 = vmatpush.msra.mxu0 0.0
        %503 = vmatpush.msra.mxu0 0.0
        %504 = vmatpush.msra.mxu0 0.0
        %505 = vmatpush.msra.mxu0 0.0
        %506 = vmatpush.msra.mxu0 0.0
        %507 = vmatpush.msra.mxu0 0.0
        %508 = vmatpush.msra.mxu0 0.0
        %509 = vmatpush.msra.mxu0 0.0
        %510 = vmatpush.msra.mxu0 0.0
        %511 = vmatpush.msra.mxu0 %v488
        %512 = vmatmul.f32.gmra.mxu0 %v491
        %v513 = vpop.f32.mrf.mxu0
        %v514 = vadd.f32 0.0, %v513
        %515 = vmatmul.f32.gmra.mxu0 %v494
        %v516 = vpop.f32.mrf.mxu0
        %v517 = vadd.f32 0.0, %v516
        %518 = vdwg.mxu0
        %v519 = vmul.f32 %v484, %v514
        %v520 = vmul.f32 %v485, %v517
        %v521 = vmul.f32 %v519, %v519
        %v522 = vmul.f32 %v520, %v520
        %v523 = vpack.c.bf16 %v522, %v521
        %v524 = vld [vmem:[#allocation5] sm:$0xf]
        %v525 = vld [vmem:[#allocation5 + $0x4] sm:$0xf]
        %v526 = vld [vmem:[#allocation5 + $0x8] sm:$0xf]
        %v527 = vld [vmem:[#allocation5 + $0xc] sm:$0xf]
        %v528 = vld [vmem:[#allocation5 + $0x10] sm:$0xf]
        %v529 = vld [vmem:[#allocation5 + $0x14] sm:$0xf]
        %v530 = vld [vmem:[#allocation5 + $0x18] sm:$0xf]
        %v531 = vld [vmem:[#allocation5 + $0x1c] sm:$0xf]
        %v532 = vld [vmem:[#allocation5 + $0x20] sm:$0xf]
        %v533 = vld [vmem:[#allocation5 + $0x24] sm:$0xf]
        %v534 = vld [vmem:[#allocation5 + $0x28] sm:$0xf]
        %v535 = vld [vmem:[#allocation5 + $0x2c] sm:$0xf]
        %v536 = vld [vmem:[#allocation5 + $0x30] sm:$0xf]
        %v537 = vld [vmem:[#allocation5 + $0x34] sm:$0xf]
        %v538 = vld [vmem:[#allocation5 + $0x38] sm:$0xf]
        %v539 = vld [vmem:[#allocation5 + $0x3c] sm:$0xf]
        %v556 = vunpack.c.l.b16 %v524
        %v557 = vunpack.c.l.b16 %v525
        %v558 = vunpack.c.l.b16 %v526
        %v559 = vunpack.c.l.b16 %v527
        %v560 = vunpack.c.l.b16 %v528
        %v561 = vunpack.c.l.b16 %v529
        %v562 = vunpack.c.l.b16 %v530
        %v563 = vunpack.c.l.b16 %v531
        %v564 = vunpack.c.l.b16 %v532
        %v565 = vunpack.c.l.b16 %v533
        %v566 = vunpack.c.l.b16 %v534
        %v567 = vunpack.c.l.b16 %v535
        %v568 = vunpack.c.l.b16 %v536
        %v569 = vunpack.c.l.b16 %v537
        %v570 = vunpack.c.l.b16 %v538
        %v571 = vunpack.c.l.b16 %v539
        %v572 = vpack.c.b16 %v557, %v556
        %v573 = vpack.c.b16 %v559, %v558
        %v574 = vpack.c.b16 %v561, %v560
        %v575 = vpack.c.b16 %v563, %v562
        %v576 = vpack.c.b16 %v565, %v564
        %v577 = vpack.c.b16 %v567, %v566
        %v578 = vpack.c.b16 %v569, %v568
        %v579 = vpack.c.b16 %v571, %v570
        %588 = vmatpush.bf16.msra.mxu0 %v579
        %589 = vmatpush.bf16.msra.mxu0 %v578
        %590 = vmatpush.bf16.msra.mxu0 %v577
        %591 = vmatpush.bf16.msra.mxu0 %v576
        %592 = vmatpush.bf16.msra.mxu0 %v575
        %593 = vmatpush.bf16.msra.mxu0 %v574
        %594 = vmatpush.bf16.msra.mxu0 %v573
        %595 = vmatpush.bf16.msra.mxu0 %v572
        %596 = vmatmul.bf16.gmra.mxu0 %v523
        %v597 = vpop.f32.mrf.mxu0
        %v598 = vadd.f32 0.0, %v597
        %v599 = vpop.f32.mrf.mxu0
        %v600 = vadd.f32 0.0, %v599
        %601 = vdwg.mxu0
        %v602 = vadd.f32 %v598, 1e-07
        %v603 = vadd.f32 %v600, 1e-07
        %v604 = vrsqrt.pop %v602
        %v605 = vmul.f32 %v604, %v602
        %v606 = vmul.f32 %v605, %v604
        %v607 = vmul.f32 0.5, %v606
        %v608 = vsub.f32 1.5, %v607
        %v609 = vmul.f32 %v604, %v608
        %vm610 = vweird.f32 %v602
        %vm611 = vweird.f32 %v604
        %vm612 = vmor %vm610, %vm611
        %v613 = vsel %vm612, %v604, %v609
        %v614 = vrsqrt.pop %v603
        %v615 = vmul.f32 %v614, %v603
        %v616 = vmul.f32 %v615, %v614
        %v617 = vmul.f32 0.5, %v616
        %v618 = vsub.f32 1.5, %v617
        %v619 = vmul.f32 %v614, %v618
        %vm620 = vweird.f32 %v603
        %vm621 = vweird.f32 %v614
        %vm622 = vmor %vm620, %vm621
        %v623 = vsel %vm622, %v614, %v619
        %v624 = vmul.f32 %v598, %v613
        %v625 = vmul.f32 %v600, %v623
        %v626 = vadd.f32 %v598, 1.0
        %v627 = vadd.f32 %v600, 1.0
        %v628 = vrcp.pop %v626
        %v629 = vrcp.pop %v627
        %v630 = vmul.f32 %v624, %v628
        %v631 = vmul.f32 %v625, %v629
        %v632 = vmul.f32 %v519, %v630
        %v633 = vmul.f32 %v520, %v631
        %634 = vst [vmem:[%s297] sm:$0xff] %v632
        %635 = vst [vmem:[%s297 + $0x8] sm:$0xff] %v633
        %s636 = sand.u32 %s166, 1
        %s637 = scalar_lea.sflag [#allocation4], %s636
        %s638 = sand.u32 %s166, 1
        %s639 = smul.addr %s638, 16
        %s640 = scalar_lea.vmem [#allocation7], %s639
        // Predicated region
        $region53: #{tpu_custom_call.1} parent=43 // pred_check
          %p641 = pneg %p176
        $region54: #{tpu_custom_call.1} parent=43 // pred_check_branch
          %643 = sbr.rel (%p641) target = $region56
        $region55: #{tpu_custom_call.1} parent=43 // pred_region
          %s644 = smul.u32 2, %s22
          %646 = vsyncadd %s637, 0
          %s647 = smul.addr %s644, 8
          %s648 = scalar_lea.hbm %s6, %s647
          %s649 = sshll.u32 %s640, 4
          %s650 = int_to_ptr.vmem [resolvable:$true] %s649
          %s651 = sshll.u32 %s648, 4
          %s652 = int_to_ptr.hbm [resolvable:$true] %s651
          %657 = dma.vmem_to_hbm [thread:$0]  %s650, 256, %s652, %s637, 128, 128, 8
        $region56: #{tpu_custom_call.1} parent=43 // pred_fallthru
          _
      $region44: #{tpu_custom_call.1} parent=5 // pred_fallthru
        _
      %p658 = scmp.le.s32.totalorder 2, %s17
      // Predicated region
      $region57: #{tpu_custom_call.1} parent=5 // pred_check
        %p659 = pneg %p658
      $region58: #{tpu_custom_call.1} parent=5 // pred_check_branch
        %661 = sbr.rel (%p659) target = $region60
      $region59: #{tpu_custom_call.1} parent=5 // pred_region
        %s662 = ssub.s32 %s17, 2
        // Predicated region
        $region61: #{tpu_custom_call.1} parent=59 // pred_check
          %p663 = pneg %p182
        $region62: #{tpu_custom_call.1} parent=59 // pred_check_branch
          %665 = sbr.rel (%p663) target = $region64
        $region63: #{tpu_custom_call.1} parent=59 // pred_region
          %s666 = sand.u32 %s167, 1
          %s667 = scalar_lea.sflag [#allocation4], %s666
          %s668 = sand.u32 %s167, 1
          %s669 = smul.addr %s668, 16
          %s670 = scalar_lea.vmem [#allocation7], %s669
          %672 = dma.done %s667, 256
        $region64: #{tpu_custom_call.1} parent=59 // pred_fallthru
          _
      $region60: #{tpu_custom_call.1} parent=5 // pred_fallthru
        _
    $region6: #{tpu_custom_call.1} parent=1 // loop_footer
      %s21 = sadd.s32 1, %s17
    $region7: #{tpu_custom_call.1} parent=1 // loop_footer_branch
      %16 = sbr.rel target = $region3
    $region8: #{tpu_custom_call.1} parent=1 // loop_exit
      _
    %673 = vsyncpa [#allocation3], 1
    %s674 = scalar_lea.sflag [#allocation3], 1
    %675 = vsyncpa %s674, 1
    %676 = vsyncpa [#allocation6], 1
    %677 = vsyncpa [#allocation4], 1
    %s678 = scalar_lea.sflag [#allocation4], 1
    %679 = vsyncpa %s678, 1

</llo_original>
